<compile_context>
chip_gen: v7x
topology: tpu7x:2x2x1
jax: 0.10.0
libtpu: 0.0.40
codegen_flags: <defaults>
</compile_context>

<pallas_src>
import jax
import jax.numpy as jnp
from jax.experimental import pallas as pl
from jax.experimental.pallas import tpu as pltpu


def _casrel_kernel(
    emb_ref,    # (BT, S, D)    bf16  token embeddings for BT batch elements
    s2tn_ref,   # (BT, S, 1)    f32   sub_head2tail / sub_len (pre-normalized)
    wenc_ref,   # (D, D)        bf16  synthetic encoder weight
    benc_ref,   # (1, D)        f32   synthetic encoder bias
    wall_ref,   # (D, NPAD)     bf16  [w_sub | w_oh | w_ot | 0-pad] fused heads
    ball_ref,   # (1, 1, NPAD)  f32   [b_sub | b_oh | b_ot | 0-pad] fused bias
    out_ref,    # (BT, S, NPAD) f32   sigmoid scores, lane-dense
):
    BT, S, D = emb_ref.shape
    NPAD = out_ref.shape[-1]

    # --- synthetic "BERT" encoder: dense + tanh (see TODO above) ---
    # Collapse (BT, S) -> rows so the MXU sees BT*S rows per matmul.
    emb = emb_ref[...].reshape(BT * S, D)                          # bf16
    enc = jnp.tanh(
        jnp.dot(emb, wenc_ref[...], preferred_element_type=jnp.float32)
        + benc_ref[...]
    )                                                              # [BT*S, D] f32

    # --- fused, lane-dense head projection (sub heads/tails + obj heads/tails)
    base = jnp.dot(enc.astype(wall_ref.dtype), wall_ref[...],
                   preferred_element_type=jnp.float32)             # [BT*S, NPAD]
    base = base.reshape(BT, S, NPAD)

    # --- get_objs_for_specific_sub via linearity ---
    # correction[b] = ((s2t[b]/sub_len[b]) @ enc[b]) @ W_heads
    #               = sum_s s2tn[b,s] * base[b,s,:]        (bias-free base)
    corr = jnp.sum(base * s2tn_ref[...], axis=1, keepdims=True)    # [BT,1,NPAD]

    # Correction applies to the obj columns only (cols >= 2); the sub
    # head/tail columns (0,1) are plain Linear(enc).  Padding columns are
    # never read back, so they may carry the correction harmlessly.
    col = jax.lax.broadcasted_iota(jnp.int32, (1, 1, NPAD), 2)
    corr = jnp.where(col >= 2, corr, 0.0)

    out_ref[...] = jax.nn.sigmoid(base + ball_ref[...] + corr)


def casrel_forward(input_ids, mask, sub_head2tail, sub_len, params):
    """Pallas implementation of CasRel.forward.

    input_ids:      [B, S] int32
    mask:           [B, S] float32   (only passed through, as in the original)
    sub_head2tail:  [B, S] float32
    sub_len:        [B, 1] float32
    """
    B, S = input_ids.shape
    D = params["emb_table"].shape[1]
    R = params["w_oh"].shape[1]

    NHEAD = 2 + 2 * R
    NPAD = ((NHEAD + 127) // 128) * 128          # lane-dense fused head width

    # Pack several batch elements per grid step (BT*S rows per matmul).
    BT = max(1, min(B, 256 // max(S, 1)))
    while B % BT:
        BT -= 1

    # Glue: embedding lookup (gather) stays in plain JAX; gathered slab stored
    # in bf16 to halve HBM traffic on the dominant byte stream.
    emb = params["emb_table"][input_ids].astype(jnp.bfloat16)      # [B, S, D]

    # Pre-normalize the span indicator so sub_len never enters the kernel.
    # (Guard the degenerate "no subject span" case; PyTorch would produce NaN.)
    safe_len = jnp.where(sub_len > 0, sub_len, 1.0).astype(jnp.float32)
    s2t_norm = (sub_head2tail.astype(jnp.float32) / safe_len)[..., None]  # [B,S,1]

    # Fuse the three head projections into one lane-dense (D, NPAD) weight
    # and one (1, 1, NPAD) bias.
    w_all = jnp.concatenate(
        [params["w_sub"], params["w_oh"], params["w_ot"]], axis=1)         # (D, NHEAD)
    w_all = jnp.pad(w_all, ((0, 0), (0, NPAD - NHEAD))).astype(jnp.bfloat16)
    b_all = jnp.concatenate(
        [params["b_sub"], params["b_oh"], params["b_ot"]], axis=1)         # (1, NHEAD)
    b_all = jnp.pad(b_all, ((0, 0), (0, NPAD - NHEAD)))[:, None, :].astype(jnp.float32)

    w_enc = params["w_enc"].astype(jnp.bfloat16)
    b_enc = params["b_enc"].astype(jnp.float32)

    const2 = lambda shape: pl.BlockSpec(shape, lambda b: (0,) * len(shape))

    scores = pl.pallas_call(
        _casrel_kernel,
        out_shape=jax.ShapeDtypeStruct((B, S, NPAD), jnp.float32),
        grid_spec=pltpu.PrefetchScalarGridSpec(
            num_scalar_prefetch=0,
            grid=(B // BT,),
            in_specs=[
                pl.BlockSpec((BT, S, D), lambda b: (b, 0, 0)),   # emb
                pl.BlockSpec((BT, S, 1), lambda b: (b, 0, 0)),   # s2t / sub_len
                const2((D, D)),                                  # w_enc
                const2((1, D)),                                  # b_enc
                const2((D, NPAD)),                               # fused head W
                const2((1, 1, NPAD)),                            # fused head b
            ],
            out_specs=pl.BlockSpec((BT, S, NPAD), lambda b: (b, 0, 0)),
        ),
        compiler_params=pltpu.CompilerParams(
            dimension_semantics=("parallel",),
        ),
    )(emb, s2t_norm, w_enc, b_enc, w_all, b_all)

    return {
        "pred_sub_heads": scores[:, :, 0:1],                     # [B, S, 1]
        "pred_sub_tails": scores[:, :, 1:2],                     # [B, S, 1]
        "pred_obj_heads": scores[:, :, 2:2 + R],                 # [B, S, R]
        "pred_obj_tails": scores[:, :, 2 + R:2 + 2 * R],         # [B, S, R]
        "mask": mask,   # only used by the loss in the original module
    }


def _reference_forward(input_ids, mask, sub_head2tail, sub_len, params):
    """Plain-JAX (f32) reference matching the PyTorch module."""
    emb = params["emb_table"][input_ids]
    enc = jnp.tanh(emb @ params["w_enc"] + params["b_enc"])
    sub_scores = jax.nn.sigmoid(enc @ params["w_sub"] + params["b_sub"])
    s2t = sub_head2tail[:, None, :].astype(jnp.float32)
    sub = (s2t @ enc) / sub_len[:, :, None]
    enc2 = enc + sub
    oh = jax.nn.sigmoid(enc2 @ params["w_oh"] + params["b_oh"])
    ot = jax.nn.sigmoid(enc2 @ params["w_ot"] + params["b_ot"])
    return sub_scores[:, :, 0:1], sub_scores[:, :, 1:2], oh, ot


if __name__ == "__main__":
    B, S, D, R, V = 2, 8, 32, 4, 50

    key = jax.random.PRNGKey(0)
    keys = jax.random.split(key, 10)

    params = {
        "emb_table": 0.1 * jax.random.normal(keys[0], (V, D), jnp.float32),
        "w_enc": 0.1 * jax.random.normal(keys[1], (D, D), jnp.float32),
        "b_enc": 0.1 * jax.random.normal(keys[2], (1, D), jnp.float32),
        "w_sub": 0.1 * jax.random.normal(keys[3], (D, 2), jnp.float32),
        "b_sub": 0.1 * jax.random.normal(keys[4], (1, 2), jnp.float32),
        "w_oh": 0.1 * jax.random.normal(keys[5], (D, R), jnp.float32),
        "b_oh": 0.1 * jax.random.normal(keys[6], (1, R), jnp.float32),
        "w_ot": 0.1 * jax.random.normal(keys[7], (D, R), jnp.float32),
        "b_ot": 0.1 * jax.random.normal(keys[8], (1, R), jnp.float32),
    }

    input_ids = jax.random.randint(keys[9], (B, S), 0, V, dtype=jnp.int32)
    mask = jnp.ones((B, S), jnp.float32).at[:, S - 2:].set(0.0)

    # subject span: tokens 1..3 marked (a "head-to-tail" indicator vector)
    sub_head2tail = jnp.zeros((B, S), jnp.float32).at[:, 1:4].set(1.0)
    sub_len = jnp.sum(sub_head2tail, axis=1, keepdims=True)      # [B, 1]

    out = casrel_forward(input_ids, mask, sub_head2tail, sub_len, params)
    jax.block_until_ready(out)

    # sanity check vs. f32 reference (kernel matmul inputs are bf16 -> looser tol)
    ref_sh, ref_st, ref_oh, ref_ot = _reference_forward(
        input_ids, mask, sub_head2tail, sub_len, params
    )
    assert out["pred_sub_heads"].shape == (B, S, 1)
    assert out["pred_obj_heads"].shape == (B, S, R)
    assert jnp.allclose(out["pred_sub_heads"], ref_sh, atol=1e-2)
    assert jnp.allclose(out["pred_sub_tails"], ref_st, atol=1e-2)
    assert jnp.allclose(out["pred_obj_heads"], ref_oh, atol=1e-2)
    assert jnp.allclose(out["pred_obj_tails"], ref_ot, atol=1e-2)

    print("KERNEL_OK")
</pallas_src>

<mosaic_0001>
module attributes {stable_mosaic.version = 11 : i64} {
  func.func @_casrel_kernel(%arg0: i32, %arg1: memref<2x8x32xbf16, #tpu.memory_space<vmem>>, %arg2: memref<2x8x1xf32, #tpu.memory_space<vmem>>, %arg3: memref<32x32xbf16, #tpu.memory_space<vmem>>, %arg4: memref<1x32xf32, #tpu.memory_space<vmem>>, %arg5: memref<32x128xbf16, #tpu.memory_space<vmem>>, %arg6: memref<1x1x128xf32, #tpu.memory_space<vmem>>, %arg7: memref<2x8x128xf32, #tpu.memory_space<vmem>>) attributes {dimension_semantics = [#tpu.dimension_semantics<parallel>], iteration_bounds = array<i64: 1>, scalar_prefetch = 0 : i64, scratch_operands = 0 : i64, tpu.core_type = #tpu.core_type<tc>, window_params = [{transform_indices = @transform_0, window_bounds = array<i64: 2, 8, 32>}, {transform_indices = @transform_1, window_bounds = array<i64: 2, 8, 1>}, {pipeline_mode = #tpu.pipeline_mode<synchronous>, transform_indices = @transform_2, window_bounds = array<i64: 32, 32>}, {pipeline_mode = #tpu.pipeline_mode<synchronous>, transform_indices = @transform_3, window_bounds = array<i64: 1, 32>}, {pipeline_mode = #tpu.pipeline_mode<synchronous>, transform_indices = @transform_4, window_bounds = array<i64: 32, 128>}, {pipeline_mode = #tpu.pipeline_mode<synchronous>, transform_indices = @transform_5, window_bounds = array<i64: 1, 1, 128>}, {transform_indices = @transform_6, window_bounds = array<i64: 2, 8, 128>}]} {
    %c0 = arith.constant 0 : index
    %c0_0 = arith.constant 0 : index
    %c0_1 = arith.constant 0 : index
    %0 = vector.load %arg1[%c0, %c0_0, %c0_1] : memref<2x8x32xbf16, #tpu.memory_space<vmem>>, vector<2x8x32xbf16>
    %1 = vector.shape_cast %0 : vector<2x8x32xbf16> to vector<16x32xbf16>
    %c0_2 = arith.constant 0 : index
    %c0_3 = arith.constant 0 : index
    %2 = vector.load %arg3[%c0_2, %c0_3] : memref<32x32xbf16, #tpu.memory_space<vmem>>, vector<32x32xbf16>
    %cst = arith.constant dense<0.000000e+00> : vector<16x32xf32>
    %3 = tpu.matmul %1, %2, %cst {dimension_numbers = #tpu.dot_dimension_numbers<[1], [0], [0], [1], [0, 0, 1, 1], [], []>} : vector<16x32xbf16>, vector<32x32xbf16>, vector<16x32xf32> -> vector<16x32xf32>
    %c0_4 = arith.constant 0 : index
    %c0_5 = arith.constant 0 : index
    %4 = vector.load %arg4[%c0_4, %c0_5] : memref<1x32xf32, #tpu.memory_space<vmem>>, vector<1x32xf32>
    %5 = vector.broadcast %4 : vector<1x32xf32> to vector<16x32xf32>
    %6 = arith.addf %3, %5 : vector<16x32xf32>
    %7 = math.tanh %6 : vector<16x32xf32>
    %8 = arith.truncf %7 : vector<16x32xf32> to vector<16x32xbf16>
    %c0_6 = arith.constant 0 : index
    %c0_7 = arith.constant 0 : index
    %9 = vector.load %arg5[%c0_6, %c0_7] : memref<32x128xbf16, #tpu.memory_space<vmem>>, vector<32x128xbf16>
    %cst_8 = arith.constant dense<0.000000e+00> : vector<16x128xf32>
    %10 = tpu.matmul %8, %9, %cst_8 {dimension_numbers = #tpu.dot_dimension_numbers<[1], [0], [0], [1], [0, 0, 1, 1], [], []>} : vector<16x32xbf16>, vector<32x128xbf16>, vector<16x128xf32> -> vector<16x128xf32>
    %11 = vector.shape_cast %10 : vector<16x128xf32> to vector<2x8x128xf32>
    %c0_9 = arith.constant 0 : index
    %c0_10 = arith.constant 0 : index
    %c0_11 = arith.constant 0 : index
    %12 = vector.load %arg2[%c0_9, %c0_10, %c0_11] : memref<2x8x1xf32, #tpu.memory_space<vmem>>, vector<2x8x1xf32>
    %13 = vector.broadcast %12 : vector<2x8x1xf32> to vector<2x8x128xf32>
    %14 = arith.mulf %11, %13 : vector<2x8x128xf32>
    %cst_12 = arith.constant dense<0.000000e+00> : vector<2x128xf32>
    %15 = vector.multi_reduction <add>, %14, %cst_12 [1] : vector<2x8x128xf32> to vector<2x128xf32>
    %16 = vector.shape_cast %15 : vector<2x128xf32> to vector<2x1x128xf32>
    %17 = tpu.iota {dimensions = array<i32: 2>} : vector<1x1x128xi32>
    %c2_i32 = arith.constant 2 : i32
    %18 = vector.broadcast %c2_i32 : i32 to vector<1x1x128xi32>
    %19 = arith.cmpi sge, %17, %18 : vector<1x1x128xi32>
    %cst_13 = arith.constant 0.000000e+00 : f32
    %20 = vector.shape_cast %19 : vector<1x1x128xi1> to vector<1x1x128xi1>
    %21 = vector.broadcast %20 : vector<1x1x128xi1> to vector<2x1x128xi1>
    %22 = vector.broadcast %cst_13 : f32 to vector<2x1x128xf32>
    %23 = arith.select %21, %16, %22 : vector<2x1x128xi1>, vector<2x1x128xf32>
    %c0_14 = arith.constant 0 : index
    %c0_15 = arith.constant 0 : index
    %c0_16 = arith.constant 0 : index
    %24 = vector.load %arg6[%c0_14, %c0_15, %c0_16] : memref<1x1x128xf32, #tpu.memory_space<vmem>>, vector<1x1x128xf32>
    %25 = vector.broadcast %24 : vector<1x1x128xf32> to vector<2x8x128xf32>
    %26 = arith.addf %11, %25 : vector<2x8x128xf32>
    %27 = vector.broadcast %23 : vector<2x1x128xf32> to vector<2x8x128xf32>
    %28 = arith.addf %26, %27 : vector<2x8x128xf32>
    %29 = arith.negf %28 : vector<2x8x128xf32>
    %30 = math.exp %29 : vector<2x8x128xf32>
    %cst_17 = arith.constant 1.000000e+00 : f32
    %31 = vector.broadcast %cst_17 : f32 to vector<2x8x128xf32>
    %32 = arith.addf %31, %30 : vector<2x8x128xf32>
    %33 = arith.divf %31, %32 : vector<2x8x128xf32>
    %c0_18 = arith.constant 0 : index
    %c0_19 = arith.constant 0 : index
    %c0_20 = arith.constant 0 : index
    %34 = vector.load %arg7[%c0_18, %c0_19, %c0_20] : memref<2x8x128xf32, #tpu.memory_space<vmem>>, vector<2x8x128xf32>
    tpu.vector_store %arg7[%c0_18, %c0_19, %c0_20], %33 {strides = array<i32>} : memref<2x8x128xf32, #tpu.memory_space<vmem>>, vector<2x8x128xf32>,
    return
  }
  func.func @transform_0(%arg0: i32) -> (i32, i32, i32) {
    %c0_i32 = arith.constant 0 : i32
    %c0_i32_0 = arith.constant 0 : i32
    %c0_i32_1 = arith.constant 0 : i32
    return %arg0, %c0_i32, %c0_i32_0 : i32, i32, i32
  }
  func.func @transform_1(%arg0: i32) -> (i32, i32, i32) {
    %c0_i32 = arith.constant 0 : i32
    %c0_i32_0 = arith.constant 0 : i32
    %c0_i32_1 = arith.constant 0 : i32
    return %arg0, %c0_i32, %c0_i32_0 : i32, i32, i32
  }
  func.func @transform_2(%arg0: i32) -> (i32, i32) {
    %c0_i32 = arith.constant 0 : i32
    %c0_i32_0 = arith.constant 0 : i32
    %c0_i32_1 = arith.constant 0 : i32
    return %c0_i32, %c0_i32_0 : i32, i32
  }
  func.func @transform_3(%arg0: i32) -> (i32, i32) {
    %c0_i32 = arith.constant 0 : i32
    %c0_i32_0 = arith.constant 0 : i32
    %c0_i32_1 = arith.constant 0 : i32
    return %c0_i32, %c0_i32_0 : i32, i32
  }
  func.func @transform_4(%arg0: i32) -> (i32, i32) {
    %c0_i32 = arith.constant 0 : i32
    %c0_i32_0 = arith.constant 0 : i32
    %c0_i32_1 = arith.constant 0 : i32
    return %c0_i32, %c0_i32_0 : i32, i32
  }
  func.func @transform_5(%arg0: i32) -> (i32, i32, i32) {
    %c0_i32 = arith.constant 0 : i32
    %c0_i32_0 = arith.constant 0 : i32
    %c0_i32_1 = arith.constant 0 : i32
    %c0_i32_2 = arith.constant 0 : i32
    return %c0_i32, %c0_i32_0, %c0_i32_1 : i32, i32, i32
  }
  func.func @transform_6(%arg0: i32) -> (i32, i32, i32) {
    %c0_i32 = arith.constant 0 : i32
    %c0_i32_0 = arith.constant 0 : i32
    %c0_i32_1 = arith.constant 0 : i32
    return %arg0, %c0_i32, %c0_i32_0 : i32, i32, i32
  }
}

</mosaic_0001>

<llo_original>
// kernel: tpu_custom_call.1
$region0: #{tpu_custom_call.1}
  #allocation0 [shape = 'u32[]', space=smem, size = 0x4, offset = 0x4, fixed_abs, tag = 'smem constant byte address 0x4 - core index']
  #allocation1 [shape = 'u32[144,128]{1,0:T(1,128)}', space=vmem, size = 0x12000, scoped, tag = 'internal scratch']
  %s0 = inlined_call_operand.hbm [shape: bf16[2,8,32], index: 0, kind: input, shape index: {}]
  %s1 = inlined_call_operand.vmem [shape: f32[2,8,1], index: 1, kind: input, shape index: {}]
  %s2 = inlined_call_operand.vmem [shape: bf16[32,32], index: 2, kind: input, shape index: {}]
  %s3 = inlined_call_operand.vmem [shape: f32[1,32], index: 3, kind: input, shape index: {}]
  %s4 = inlined_call_operand.vmem [shape: bf16[32,128], index: 4, kind: input, shape index: {}]
  %s5 = inlined_call_operand.vmem [shape: f32[1,1,128], index: 5, kind: input, shape index: {}]
  %s6 = inlined_call_operand.hbm [shape: f32[2,8,128], index: 6, kind: output, shape index: {}]
  %s7 = sld [smem:[#allocation0]]
  $region38: #{tpu_custom_call.1} parent=0
    _
  %s9 = ssub.s32 1, %s7
  %s10 = scalar_select 0, %s9, %s7
  $region1: #{tpu_custom_call.1} parent=0
    #allocation2 [shape = 'u8[4096]{0}', space=vmem, size = 0x1000, scoped, tag = 'input window, operand 0, single buffered']
    #allocation3 [shape = 's32[1]{0}', space=sflag, size = 0x4, scoped, tag = 'scoped memory for tpu_custom_call.1']
    #allocation4 [shape = 's32[1]{0}', space=sflag, size = 0x4, scoped, tag = 'scoped memory for tpu_custom_call.1']
    #allocation5 [shape = 'u8[8192]{0}', space=vmem, size = 0x2000, scoped, tag = 'output window, operand 0, single buffered']
    %11 = vsyncpa [#allocation3], 0
    %12 = vsyncpa [#allocation4], 0
    // Predicated region
    $region2: #{tpu_custom_call.1} parent=1 // pred_check
      _
    $region3: #{tpu_custom_call.1} parent=1 // pred_check_branch
      %14 = sbr.rel (0) target = $region5
    $region4: #{tpu_custom_call.1} parent=1 // pred_region
      %s16 = ssub.s32 128, 128
      %17 = vsyncadd [#allocation3], %s16
      %s18 = sshll.u32 [#allocation2], 4
      %s19 = int_to_ptr.vmem [resolvable:$true] %s18
      %24 = dma.hbm_to_vmem [thread:$0]  %s0, 128, %s19, [#allocation3], 64, 64, 4
    $region5: #{tpu_custom_call.1} parent=1 // pred_fallthru
      _
    // Predicated region
    $region6: #{tpu_custom_call.1} parent=1 // pred_check
      _
    $region7: #{tpu_custom_call.1} parent=1 // pred_check_branch
      %26 = sbr.rel (0) target = $region9
    $region8: #{tpu_custom_call.1} parent=1 // pred_region
      _
    $region9: #{tpu_custom_call.1} parent=1 // pred_fallthru
      _
    // Predicated region
    $region10: #{tpu_custom_call.1} parent=1 // pred_check
      _
    $region11: #{tpu_custom_call.1} parent=1 // pred_check_branch
      %28 = sbr.rel (0) target = $region13
    $region12: #{tpu_custom_call.1} parent=1 // pred_region
      _
    $region13: #{tpu_custom_call.1} parent=1 // pred_fallthru
      _
    // Predicated region
    $region14: #{tpu_custom_call.1} parent=1 // pred_check
      _
    $region15: #{tpu_custom_call.1} parent=1 // pred_check_branch
      %30 = sbr.rel (0) target = $region17
    $region16: #{tpu_custom_call.1} parent=1 // pred_region
      _
    $region17: #{tpu_custom_call.1} parent=1 // pred_fallthru
      _
    // Predicated region
    $region18: #{tpu_custom_call.1} parent=1 // pred_check
      _
    $region19: #{tpu_custom_call.1} parent=1 // pred_check_branch
      %32 = sbr.rel (0) target = $region21
    $region20: #{tpu_custom_call.1} parent=1 // pred_region
      _
    $region21: #{tpu_custom_call.1} parent=1 // pred_fallthru
      _
    // Predicated region
    $region22: #{tpu_custom_call.1} parent=1 // pred_check
      _
    $region23: #{tpu_custom_call.1} parent=1 // pred_check_branch
      %34 = sbr.rel (0) target = $region25
    $region24: #{tpu_custom_call.1} parent=1 // pred_region
      _
    $region25: #{tpu_custom_call.1} parent=1 // pred_fallthru
      _
    // Predicated region
    $region26: #{tpu_custom_call.1} parent=1 // pred_check
      _
    $region27: #{tpu_custom_call.1} parent=1 // pred_check_branch
      %36 = sbr.rel (0) target = $region29
    $region28: #{tpu_custom_call.1} parent=1 // pred_region
      %37 = dma.done [#allocation3], 128
    $region29: #{tpu_custom_call.1} parent=1 // pred_fallthru
      _
    %v39 = vld [vmem:[#allocation2] sm:$0xf]
    %v40 = vld [vmem:[#allocation2 + $0x4] sm:$0xf]
    %v41 = vld [vmem:[%s2] sm:$0xf]
    %v42 = vld [vmem:[%s2 + $0x4] sm:$0xf]
    %v43 = vld [vmem:[%s2 + $0x8] sm:$0xf]
    %v44 = vld [vmem:[%s2 + $0xc] sm:$0xf]
    %v45 = vld [vmem:[%s3] sm:$0x1]
    %v47 = vlaneseq
    %v48 = vshrl.u32 %v47, 7
    %v49 = vsub.s32 0, %v48
    %v50 = vrot.slane %v45, %v49
    %v54 = vunpack.c.l.b16 %v39
    %v55 = vunpack.c.l.b16 %v40
    %v56 = vpack.c.b16 %v55, %v54
    %v61 = vunpack.c.l.b16 %v41
    %v62 = vunpack.c.l.b16 %v42
    %v63 = vunpack.c.l.b16 %v43
    %v64 = vunpack.c.l.b16 %v44
    %v65 = vpack.c.b16 %v62, %v61
    %v66 = vpack.c.b16 %v64, %v63
    %vm69 = vcmask 261120
    %v71 = vsel %vm69, %v56, 0
    %73 = vmatprep.subr.bf16.mxu0 0
    %74 = vmatpush1.bf16.msra.mxu0 %v65
    %75 = vmatprep.subr.bf16.mxu0 0
    %76 = vmatpush1.bf16.msra.mxu0 %v66
    %77 = vmatprep.subr.bf16.mxu0 0
    %78 = vmatpush1.bf16.msra.mxu0 0
    %79 = vmatprep.subr.bf16.mxu0 0
    %80 = vmatpush1.bf16.msra.mxu0 0
    %81 = vmatprep.subr.bf16.mxu0 0
    %82 = vmatpush1.bf16.msra.mxu0 0
    %83 = vmatprep.subr.bf16.mxu0 0
    %84 = vmatpush1.bf16.msra.mxu0 0
    %85 = vmatprep.subr.bf16.mxu0 0
    %86 = vmatpush1.bf16.msra.mxu0 0
    %87 = vmatprep.subr.bf16.mxu0 0
    %88 = vmatpush1.bf16.msra.mxu0 0
    %89 = vmatprep.subr.bf16.mxu0 0
    %90 = vmatpush1.bf16.msra.mxu0 0
    %91 = vmatprep.subr.bf16.mxu0 0
    %92 = vmatpush1.bf16.msra.mxu0 0
    %93 = vmatprep.subr.bf16.mxu0 0
    %94 = vmatpush1.bf16.msra.mxu0 0
    %95 = vmatprep.subr.bf16.mxu0 0
    %96 = vmatpush1.bf16.msra.mxu0 0
    %97 = vmatprep.subr.bf16.mxu0 0
    %98 = vmatpush1.bf16.msra.mxu0 0
    %99 = vmatprep.subr.bf16.mxu0 0
    %100 = vmatpush1.bf16.msra.mxu0 0
    %101 = vmatprep.subr.bf16.mxu0 0
    %102 = vmatpush1.bf16.msra.mxu0 0
    %103 = vmatprep.subr.bf16.mxu0 0
    %104 = vmatpush1.bf16.msra.mxu0 0
    %105 = vmatprep.mubr.bf16.mxu0 0
    %106 = vmatmul.mubr.bf16.gmra.mrb[0].mxu0 %v71
    %v107 = vpop.f32.mrb[0].mxu0
    %v108 = vadd.f32 %v50, %v107
    %v109 = vpop.f32.mrb[0].mxu0
    %v110 = vpop.f32.mrb[0].mxu0
    %v111 = vadd.f32 %v50, %v110
    %v112 = vpop.f32.mrb[0].mxu0
    %113 = vdwg.mxu0
    %v114 = vtanh.pop %v108
    %v115 = vtanh.pop %v111
    %v116 = vpack.c.bf16 %v115, %v114
    %v117 = vld [vmem:[%s4] sm:$0xf]
    %v118 = vld [vmem:[%s4 + $0x4] sm:$0xf]
    %v119 = vld [vmem:[%s4 + $0x8] sm:$0xf]
    %v120 = vld [vmem:[%s4 + $0xc] sm:$0xf]
    %v125 = vunpack.c.l.b16 %v117
    %v126 = vunpack.c.l.b16 %v118
    %v127 = vunpack.c.l.b16 %v119
    %v128 = vunpack.c.l.b16 %v120
    %v129 = vpack.c.b16 %v126, %v125
    %v130 = vpack.c.b16 %v128, %v127
    %v134 = vsel %vm69, %v116, 0
    %136 = vmatprep.subr.bf16.mxu0 0
    %137 = vmatpush1.bf16.msra.mxu0 %v129
    %138 = vmatprep.subr.bf16.mxu0 0
    %139 = vmatpush1.bf16.msra.mxu0 %v130
    %140 = vmatprep.subr.bf16.mxu0 0
    %141 = vmatpush1.bf16.msra.mxu0 0
    %142 = vmatprep.subr.bf16.mxu0 0
    %143 = vmatpush1.bf16.msra.mxu0 0
    %144 = vmatprep.subr.bf16.mxu0 0
    %145 = vmatpush1.bf16.msra.mxu0 0
    %146 = vmatprep.subr.bf16.mxu0 0
    %147 = vmatpush1.bf16.msra.mxu0 0
    %148 = vmatprep.subr.bf16.mxu0 0
    %149 = vmatpush1.bf16.msra.mxu0 0
    %150 = vmatprep.subr.bf16.mxu0 0
    %151 = vmatpush1.bf16.msra.mxu0 0
    %152 = vmatprep.subr.bf16.mxu0 0
    %153 = vmatpush1.bf16.msra.mxu0 0
    %154 = vmatprep.subr.bf16.mxu0 0
    %155 = vmatpush1.bf16.msra.mxu0 0
    %156 = vmatprep.subr.bf16.mxu0 0
    %157 = vmatpush1.bf16.msra.mxu0 0
    %158 = vmatprep.subr.bf16.mxu0 0
    %159 = vmatpush1.bf16.msra.mxu0 0
    %160 = vmatprep.subr.bf16.mxu0 0
    %161 = vmatpush1.bf16.msra.mxu0 0
    %162 = vmatprep.subr.bf16.mxu0 0
    %163 = vmatpush1.bf16.msra.mxu0 0
    %164 = vmatprep.subr.bf16.mxu0 0
    %165 = vmatpush1.bf16.msra.mxu0 0
    %166 = vmatprep.subr.bf16.mxu0 0
    %167 = vmatpush1.bf16.msra.mxu0 0
    %168 = vmatprep.mubr.bf16.mxu0 0
    %169 = vmatmul.mubr.bf16.gmra.mrb[0].mxu0 %v134
    %v170 = vpop.f32.mrb[0].mxu0
    %v171 = vadd.f32 0.0, %v170
    %v172 = vpop.f32.mrb[0].mxu0
    %v173 = vpop.f32.mrb[0].mxu0
    %v174 = vadd.f32 0.0, %v173
    %v175 = vpop.f32.mrb[0].mxu0
    %176 = vdwg.mxu0
    %v177 = vld [vmem:[%s1] sm:$0xff]
    %v178 = vld [vmem:[%s1 + $0x8] sm:$0xff]
    %180 = vset.pattern.permute.xlu0 0
    %181 = vperm.xlu0 %180, %v177
    %v182 = vpop.permute.xlu0 %181
    %185 = vset.pattern.permute.xlu0 0
    %186 = vperm.xlu0 %185, %v178
    %v187 = vpop.permute.xlu0 %186
    %v189 = vmul.f32 %v171, %v182
    %v190 = vmul.f32 %v174, %v187
    %v191 = vrot.slane %v189, 4
    %v192 = vadd.f32 %v189, %v191
    %v193 = vrot.slane %v192, 2
    %v194 = vadd.f32 %v192, %v193
    %v195 = vrot.slane %v194, 1
    %v196 = vadd.f32 %v194, %v195
    %v197 = vrot.slane %v190, 4
    %v198 = vadd.f32 %v190, %v197
    %v199 = vrot.slane %v198, 2
    %v200 = vadd.f32 %v198, %v199
    %v201 = vrot.slane %v200, 1
    %v202 = vadd.f32 %v200, %v201
    %v203 = vlaneseq
    %v204 = vand.u32 %v203, 127
    %vm205 = vcmp.ge.s32.totalorder %v204, 2
    %v206 = vsel %vm205, 1, 0
    %vm207 = vcmp.eq.s32.totalorder %v206, 1
    %v208 = vsel %vm207, %v196, 0.0
    %v209 = vsel %vm207, %v202, 0.0
    %v210 = vld [vmem:[%s5] sm:$0x1]
    %v212 = vlaneseq
    %v213 = vshrl.u32 %v212, 7
    %v214 = vsub.s32 0, %v213
    %v215 = vrot.slane %v210, %v214
    %v217 = vadd.f32 %v171, %v215
    %v218 = vadd.f32 %v174, %v215
    %v219 = vadd.f32 %v217, %v208
    %v220 = vadd.f32 %v218, %v209
    %v221 = vxor.u32 %v219, 2147483648
    %v222 = vxor.u32 %v220, 2147483648
    %v223 = vmul.f32 %v221, 1.442695
    %v224 = vpow.pop %v223
    %v225 = vmul.f32 %v222, 1.442695
    %v226 = vpow.pop %v225
    %v227 = vadd.f32 %v224, 1.0
    %v228 = vadd.f32 %v226, 1.0
    %v229 = vrcp.pop %v227
    %v230 = vmul.f32 1.0, %v229
    %v231 = vrcp.pop %v228
    %v232 = vmul.f32 1.0, %v231
    %233 = vst [vmem:[#allocation5] sm:$0xff] %v230
    %234 = vst [vmem:[#allocation5 + $0x8] sm:$0xff] %v232
    // Predicated region
    $region30: #{tpu_custom_call.1} parent=1 // pred_check
      _
    $region31: #{tpu_custom_call.1} parent=1 // pred_check_branch
      %236 = sbr.rel (0) target = $region33
    $region32: #{tpu_custom_call.1} parent=1 // pred_region
      %s238 = ssub.s32 256, 256
      %239 = vsyncadd [#allocation4], %s238
      %s240 = sshll.u32 [#allocation5], 4
      %s241 = int_to_ptr.vmem [resolvable:$true] %s240
      %246 = dma.vmem_to_hbm [thread:$0]  %s241, 256, %s6, [#allocation4], 128, 128, 8
    $region33: #{tpu_custom_call.1} parent=1 // pred_fallthru
      _
    // Predicated region
    $region34: #{tpu_custom_call.1} parent=1 // pred_check
      _
    $region35: #{tpu_custom_call.1} parent=1 // pred_check_branch
      %248 = sbr.rel (0) target = $region37
    $region36: #{tpu_custom_call.1} parent=1 // pred_region
      %249 = dma.done [#allocation4], 256
    $region37: #{tpu_custom_call.1} parent=1 // pred_fallthru
      _
    %250 = vsyncpa [#allocation3], 1
    %251 = vsyncpa [#allocation4], 1

</llo_original>
